<compile_context>
chip_gen: v5e
topology: v5e:2x2
jax: 0.10.0
libtpu: 0.0.40
codegen_flags: <defaults>
</compile_context>

<pallas_src>
import functools

import jax
import jax.numpy as jnp
from jax.experimental import pallas as pl
from jax.experimental.pallas import tpu as pltpu


def _elu(x):
    return jnp.where(x > 0, x, jnp.exp(x) - 1.0)


def _pick_tile(n, cap=128):
    """Largest multiple of 8 that divides n (capped); falls back to n."""
    t = min(cap, n)
    t = max(8, t - (t % 8))
    while n % t:
        t -= 8
        if t < 8:
            return n
    return t


# --------------------------------------------------------------------------
# Kernel 1: per-head feature transform with folded attention vectors.
#   w_ext[h] = [W[h] | W[h]@a1[h] | W[h]@a2[h]]  (nfeat, nhid+2)
#   one matmul yields [Wh | wh1 | wh2] per row tile.
# --------------------------------------------------------------------------
def wh_precompute_kernel(x_ref, wext_ref, wh_ref, wh1_ref, wh2_ref, *, nhid):
    whf = jnp.dot(x_ref[...], wext_ref[0], preferred_element_type=jnp.float32)
    wh_ref[0] = whf[:, :nhid]                  # (TR, nhid)   key/value features
    wh1_ref[0] = whf[:, nhid:nhid + 1]         # (TR, 1)      query logit term
    wh2_ref[0] = whf[:, nhid + 1:nhid + 2]     # (TR, 1)      key logit term


# --------------------------------------------------------------------------
# Kernel 2: row-tiled masked attention + ELU + fused output projection.
# Grid = (row_blocks, nheads); head axis is innermost + "arbitrary"
# (accumulation axis), row axis is "parallel" (megacore sharding on v7x).
# --------------------------------------------------------------------------
def gat_attn_kernel(mask_ref, wh_ref, wh1_ref, wh2t_ref, woh_ref, b_ref,
                    o_ref, acc_ref, *, alpha):
    h = pl.program_id(1)

    @pl.when(h == 0)
    def _():
        acc_ref[...] = jnp.zeros_like(acc_ref)

    wh_keys = wh_ref[0]        # (N, nhid)  all keys for this head
    wh1_q = wh1_ref[0]         # (TQ, 1)    query-side logit term (this row tile)
    wh2_row = wh2t_ref[0]      # (1, N)     key-side logit term (pre-transposed)

    # Attention logits: e[i, j] = leakyrelu(wh1[i] + wh2[j]) + mask[i, j]
    e = wh1_q + wh2_row                                   # (TQ, N)
    e = jnp.where(e > 0, e, alpha * e)                    # LeakyReLU
    e = e + mask_ref[...].astype(jnp.float32)             # additive -9e15 mask

    # Numerically stable softmax over keys; reciprocal on the EUP slot.
    e = e - jnp.max(e, axis=1, keepdims=True)
    p = jnp.exp(e)
    inv = pl.reciprocal(jnp.sum(p, axis=1, keepdims=True), approx=True)
    attn = p * inv

    # Aggregate, per-head ELU (concat=True), then fused out_proj accumulation.
    h_prime = jnp.dot(attn, wh_keys, preferred_element_type=jnp.float32)
    head_out = _elu(h_prime)                              # (TQ, nhid)
    acc_ref[...] += jnp.dot(head_out, woh_ref[0],
                            preferred_element_type=jnp.float32)

    @pl.when(h == pl.num_programs(1) - 1)
    def _():
        y = acc_ref[...] + b_ref[...]
        o_ref[...] = _elu(y)                              # final ELU


# --------------------------------------------------------------------------
# Wrapper
# --------------------------------------------------------------------------
def gat_forward(x, adj, params, alpha, *, tile_q=None, tile_r=None):
    """Full GAT forward (eval mode: dropout = identity)."""
    W, a1, a2 = params["W"], params["a1"], params["a2"]
    nheads, nfeat, nhid = W.shape
    N = x.shape[0]
    he = nhid + 2

    # ---- parameter prep (params only; no activation-sized compute) ----
    v1 = jnp.einsum("hfk,hk->hf", W, a1[:, 0, :])[..., None]   # (H, F, 1)
    v2 = jnp.einsum("hfk,hk->hf", W, a2[:, 0, :])[..., None]   # (H, F, 1)
    w_ext = jnp.concatenate([W, v1, v2], axis=-1)              # (H, F, nhid+2)
    wout_heads = params["Wout_T"].reshape(nheads, nhid, nhid)  # per-head slices
    b_out = params["b_out"].reshape(1, nhid)
    # Additive mask in bf16: 2x byte reduction on the dominant HBM stream.
    mask = jnp.where(adj > 0, 0.0, -9e15).astype(jnp.bfloat16)

    tr = tile_r or _pick_tile(N)
    tq = tile_q or _pick_tile(N)

    # ---- kernel 1: [Wh | wh1 | wh2] per head, row-tiled ----
    wh, wh1, wh2 = pl.pallas_call(
        functools.partial(wh_precompute_kernel, nhid=nhid),
        out_shape=(
            jax.ShapeDtypeStruct((nheads, N, nhid), jnp.float32),
            jax.ShapeDtypeStruct((nheads, N, 1), jnp.float32),
            jax.ShapeDtypeStruct((nheads, N, 1), jnp.float32),
        ),
        grid=(N // tr, nheads),          # head innermost: x strip DMA'd once/row
        in_specs=[
            pl.BlockSpec((tr, nfeat), lambda r, h: (r, 0)),
            pl.BlockSpec((1, nfeat, he), lambda r, h: (h, 0, 0)),
        ],
        out_specs=(
            pl.BlockSpec((1, tr, nhid), lambda r, h: (h, r, 0)),
            pl.BlockSpec((1, tr, 1), lambda r, h: (h, r, 0)),
            pl.BlockSpec((1, tr, 1), lambda r, h: (h, r, 0)),
        ),
        compiler_params=pltpu.CompilerParams(
            dimension_semantics=("parallel", "parallel")),
    )(x, w_ext)

    # Tiny (H, N, 1) -> (H, 1, N) relayout so the kernel never transposes
    # across lanes; negligible bytes (replaces the old full-tensor transpose).
    wh2t = jnp.swapaxes(wh2, 1, 2)

    # ---- kernel 2: attention + fused out_proj ----
    out = pl.pallas_call(
        functools.partial(gat_attn_kernel, alpha=float(alpha)),
        out_shape=jax.ShapeDtypeStruct((N, nhid), jnp.float32),
        grid=(N // tq, nheads),          # rows outer ("parallel"), heads inner
        in_specs=[
            pl.BlockSpec((tq, N), lambda r, h: (r, 0)),            # mask strip
            pl.BlockSpec((1, N, nhid), lambda r, h: (h, 0, 0)),    # Wh (keys)
            pl.BlockSpec((1, tq, 1), lambda r, h: (h, r, 0)),      # wh1 (queries)
            pl.BlockSpec((1, 1, N), lambda r, h: (h, 0, 0)),       # wh2^T (keys)
            pl.BlockSpec((1, nhid, nhid), lambda r, h: (h, 0, 0)), # out-proj slice
            pl.BlockSpec((1, nhid), lambda r, h: (0, 0)),          # bias
        ],
        out_specs=pl.BlockSpec((tq, nhid), lambda r, h: (r, 0)),   # head-resident
        scratch_shapes=[pltpu.VMEM((tq, nhid), jnp.float32)],      # accumulator
        compiler_params=pltpu.CompilerParams(
            dimension_semantics=("parallel", "arbitrary"),
            vmem_limit_bytes=48 * 1024 * 1024),   # safe on v5e/v6e (128 MiB) and v7x (64 MiB)
    )(mask, wh, wh1, wh2t, wout_heads, b_out)
    return out


def gat_reference(x, adj, params, alpha):
    """Pure-JAX reference mirroring the torch module (eval mode)."""
    W, a1, a2 = params["W"], params["a1"], params["a2"]
    outs = []
    for h in range(W.shape[0]):
        wh = x @ W[h]
        wh1 = jnp.sum(wh * a1[h], axis=-1, keepdims=True)
        wh2 = jnp.sum(wh * a2[h], axis=-1, keepdims=True)
        e = wh1 + wh2.T
        e = jnp.where(e > 0, e, alpha * e)
        e = jnp.where(adj > 0, e, -9e15)
        attn = jax.nn.softmax(e, axis=1)
        outs.append(jax.nn.elu(attn @ wh))
    x_cat = jnp.concatenate(outs, axis=1)
    return jax.nn.elu(x_cat @ params["Wout_T"] + params["b_out"])


if __name__ == "__main__":
    # Small shapes consistent with the module.
    N, nfeat, nhid, nheads = 16, 16, 8, 4
    alpha = 0.2

    key = jax.random.PRNGKey(0)
    k_x, k_adj, k_w, k_a, k_wo, k_bo = jax.random.split(key, 6)

    x = jax.random.normal(k_x, (N, nfeat), dtype=jnp.float32)
    # Random sparse adjacency with self-loops.
    adj = (jax.random.uniform(k_adj, (N, N)) < 0.3).astype(jnp.float32)
    adj = jnp.maximum(adj, jnp.eye(N, dtype=jnp.float32))

    # GraphAttentionLayer params: W (nfeat, nhid), a (2*nhid, 1) per head.
    W = 0.1 * jax.random.normal(k_w, (nheads, nfeat, nhid), dtype=jnp.float32)
    a_full = 0.1 * jax.random.normal(k_a, (nheads, 2 * nhid), dtype=jnp.float32)
    a1 = a_full[:, :nhid].reshape(nheads, 1, nhid)
    a2 = a_full[:, nhid:].reshape(nheads, 1, nhid)

    # out_proj: nn.Linear(nhid*nheads, nhid); weight ~ N(0, 0.05).
    Wout = 0.05 * jax.random.normal(k_wo, (nhid, nhid * nheads), dtype=jnp.float32)
    b_out = 0.01 * jax.random.normal(k_bo, (nhid,), dtype=jnp.float32)

    params = {
        "W": W,
        "a1": a1,
        "a2": a2,
        "Wout_T": Wout.T,                 # pre-transposed for x @ W^T
        "b_out": b_out.reshape(1, nhid),
    }

    # tile_q/tile_r = 8 exercises the multi-block row pipeline at N=16.
    out = gat_forward(x, adj, params, alpha, tile_q=8, tile_r=8)
    out = jax.block_until_ready(out)

    ref = gat_reference(x, adj, params, alpha)
    assert out.shape == (N, nhid)
    # Tolerance covers pl.reciprocal(approx=True) and the bf16 additive mask.
    assert jnp.allclose(out, ref, atol=5e-3, rtol=5e-3), "mismatch vs reference"

    print("KERNEL_OK")
</pallas_src>

<mosaic_0001>
module attributes {stable_mosaic.version = 11 : i64} {
  func.func @wh_precompute_kernel(%arg0: i32, %arg1: i32, %arg2: memref<8x16xf32, #tpu.memory_space<vmem>>, %arg3: memref<1x16x10xf32, #tpu.memory_space<vmem>>, %arg4: memref<1x8x8xf32, #tpu.memory_space<vmem>>, %arg5: memref<1x8x1xf32, #tpu.memory_space<vmem>>, %arg6: memref<1x8x1xf32, #tpu.memory_space<vmem>>) attributes {dimension_semantics = [#tpu.dimension_semantics<parallel>, #tpu.dimension_semantics<parallel>], iteration_bounds = array<i64: 2, 4>, scalar_prefetch = 0 : i64, scratch_operands = 0 : i64, tpu.core_type = #tpu.core_type<tc>, window_params = [{transform_indices = @transform_0, window_bounds = array<i64: 8, 16>}, {transform_indices = @transform_1, window_bounds = array<i64: 1, 16, 10>}, {transform_indices = @transform_2, window_bounds = array<i64: 1, 8, 8>}, {transform_indices = @transform_3, window_bounds = array<i64: 1, 8, 1>}, {transform_indices = @transform_4, window_bounds = array<i64: 1, 8, 1>}]} {
    %c0 = arith.constant 0 : index
    %c0_0 = arith.constant 0 : index
    %0 = vector.load %arg2[%c0, %c0_0] : memref<8x16xf32, #tpu.memory_space<vmem>>, vector<8x16xf32>
    %c0_1 = arith.constant 0 : index
    %c0_2 = arith.constant 0 : index
    %c0_3 = arith.constant 0 : index
    %1 = vector.load %arg3[%c0_1, %c0_2, %c0_3] : memref<1x16x10xf32, #tpu.memory_space<vmem>>, vector<1x16x10xf32>
    %2 = vector.shape_cast %1 : vector<1x16x10xf32> to vector<16x10xf32>
    %cst = arith.constant dense<0.000000e+00> : vector<8x10xf32>
    %3 = tpu.matmul %0, %2, %cst {dimension_numbers = #tpu.dot_dimension_numbers<[1], [0], [0], [1], [0, 0, 1, 1], [], []>} : vector<8x16xf32>, vector<16x10xf32>, vector<8x10xf32> -> vector<8x10xf32>
    %4 = vector.extract_strided_slice %3 {offsets = [0, 0], sizes = [8, 8], strides = [1, 1]} : vector<8x10xf32> to vector<8x8xf32>
    %c0_4 = arith.constant 0 : index
    %c0_5 = arith.constant 0 : index
    %c0_6 = arith.constant 0 : index
    %5 = vector.load %arg4[%c0_4, %c0_5, %c0_6] : memref<1x8x8xf32, #tpu.memory_space<vmem>>, vector<1x8x8xf32>
    %6 = vector.shape_cast %5 : vector<1x8x8xf32> to vector<8x8xf32>
    %7 = vector.shape_cast %4 : vector<8x8xf32> to vector<1x8x8xf32>
    tpu.vector_store %arg4[%c0_4, %c0_5, %c0_6], %7 {strides = array<i32>} : memref<1x8x8xf32, #tpu.memory_space<vmem>>, vector<1x8x8xf32>,
    %8 = vector.extract_strided_slice %3 {offsets = [0, 8], sizes = [8, 1], strides = [1, 1]} : vector<8x10xf32> to vector<8x1xf32>
    %c0_7 = arith.constant 0 : index
    %c0_8 = arith.constant 0 : index
    %c0_9 = arith.constant 0 : index
    %9 = vector.load %arg5[%c0_7, %c0_8, %c0_9] : memref<1x8x1xf32, #tpu.memory_space<vmem>>, vector<1x8x1xf32>
    %10 = vector.shape_cast %9 : vector<1x8x1xf32> to vector<8x1xf32>
    %11 = vector.shape_cast %8 : vector<8x1xf32> to vector<1x8x1xf32>
    tpu.vector_store %arg5[%c0_7, %c0_8, %c0_9], %11 {strides = array<i32>} : memref<1x8x1xf32, #tpu.memory_space<vmem>>, vector<1x8x1xf32>,
    %12 = vector.extract_strided_slice %3 {offsets = [0, 9], sizes = [8, 1], strides = [1, 1]} : vector<8x10xf32> to vector<8x1xf32>
    %c0_10 = arith.constant 0 : index
    %c0_11 = arith.constant 0 : index
    %c0_12 = arith.constant 0 : index
    %13 = vector.load %arg6[%c0_10, %c0_11, %c0_12] : memref<1x8x1xf32, #tpu.memory_space<vmem>>, vector<1x8x1xf32>
    %14 = vector.shape_cast %13 : vector<1x8x1xf32> to vector<8x1xf32>
    %15 = vector.shape_cast %12 : vector<8x1xf32> to vector<1x8x1xf32>
    tpu.vector_store %arg6[%c0_10, %c0_11, %c0_12], %15 {strides = array<i32>} : memref<1x8x1xf32, #tpu.memory_space<vmem>>, vector<1x8x1xf32>,
    return
  }
  func.func @transform_0(%arg0: i32, %arg1: i32) -> (i32, i32) {
    %c0_i32 = arith.constant 0 : i32
    %c0_i32_0 = arith.constant 0 : i32
    return %arg0, %c0_i32 : i32, i32
  }
  func.func @transform_1(%arg0: i32, %arg1: i32) -> (i32, i32, i32) {
    %c0_i32 = arith.constant 0 : i32
    %c0_i32_0 = arith.constant 0 : i32
    %c0_i32_1 = arith.constant 0 : i32
    return %arg1, %c0_i32, %c0_i32_0 : i32, i32, i32
  }
  func.func @transform_2(%arg0: i32, %arg1: i32) -> (i32, i32, i32) {
    %c0_i32 = arith.constant 0 : i32
    %c0_i32_0 = arith.constant 0 : i32
    return %arg1, %arg0, %c0_i32 : i32, i32, i32
  }
  func.func @transform_3(%arg0: i32, %arg1: i32) -> (i32, i32, i32) {
    %c0_i32 = arith.constant 0 : i32
    %c0_i32_0 = arith.constant 0 : i32
    return %arg1, %arg0, %c0_i32 : i32, i32, i32
  }
  func.func @transform_4(%arg0: i32, %arg1: i32) -> (i32, i32, i32) {
    %c0_i32 = arith.constant 0 : i32
    %c0_i32_0 = arith.constant 0 : i32
    return %arg1, %arg0, %c0_i32 : i32, i32, i32
  }
}

</mosaic_0001>

<llo_original>
// kernel: tpu_custom_call.1
$region0: #{tpu_custom_call.1}
  #allocation0 [shape = 'u32[]', space=smem, size = 0x4, offset = 0x4, fixed_abs, tag = 'smem constant byte address 0x4 - core index']
  #allocation1 [shape = 'u32[72,128]{1,0:T(1,128)}', space=vmem, size = 0x9000, scoped, tag = 'internal scratch']
  %s0 = inlined_call_operand.vmem [shape: f32[16,16], index: 0, kind: input, shape index: {}]
  %s1 = inlined_call_operand.vmem [shape: f32[4,16,10], index: 1, kind: input, shape index: {}]
  %s2 = inlined_call_operand.vmem [shape: f32[4,16,8], index: 2, kind: output, shape index: {0}]
  %s3 = inlined_call_operand.vmem [shape: f32[4,16,1], index: 3, kind: output, shape index: {1}]
  %s4 = inlined_call_operand.vmem [shape: f32[4,16,1], index: 4, kind: output, shape index: {2}]
  %5 = xla_tuple %s2, %s3, %s4
  %s6 = sld [smem:[#allocation0]]
  $region57: #{tpu_custom_call.1} parent=0
    _
  %s8 = ssub.s32 1, %s6
  %s9 = scalar_select 0, %s8, %s6
  loop: start=0, step=1, limit=10
  $region2: #{tpu_custom_call.1} parent=0 // loop_pre_header
    _
  $region3: #{tpu_custom_call.1} parent=0 // loop_header
    %s11 = sphi 0, %s15
    %p12 = scmp.ge.s32.totalorder %s11, 10
    %s18 = sphi 0, %s30
    %s19 = sphi 0, %s26
    %s20 = sphi 0, %s18
    %s21 = sphi 0, %s19
    %s22 = sphi 0, %s20
    %s23 = sphi 0, %s21
    %s33 = sphi 0, %s35
    %s36 = sphi 0, %s33
    %s37 = sphi 0, %s36
    %s53 = sphi 0, %s37
    %s59 = sphi 0, %s61
    %s62 = sphi 0, %s59
    %s63 = sphi 0, %s62
    %s79 = sphi 0, %s63
    %s87 = sphi 0, %s89
    %s90 = sphi 0, %s87
    %s91 = sphi 0, %s90
    %s107 = sphi 0, %s91
    %s115 = sphi 0, %s117
    %s118 = sphi 0, %s115
    %s119 = sphi 0, %s118
    %s135 = sphi 0, %s119
    %s143 = sphi 0, %s145
    %s146 = sphi 0, %s143
    %s147 = sphi 0, %s146
    %s163 = sphi 0, %s147
  $region4: #{tpu_custom_call.1} parent=0 // loop_header_branch
    %14 = sbr.rel (%p12) target = $region8
  $region5: #{tpu_custom_call.1} parent=0 // loop_body
    %s16 = ssub.s32 %s11, 1
    %s17 = ssub.s32 %s11, 2
    %s24 = sadd.s32 1, %s19
    %p25 = scmp.ge.s32.totalorder %s24, 4
    %s26 = scalar_select %p25, 0, %s24
    %s27 = sadd.s32 1, %s18
    %s28 = scalar_select %p25, %s27, %s18
    %p29 = scmp.ge.s32.totalorder %s28, 2
    %s30 = scalar_select %p29, 0, %s28
    %s31 = ssub.s32 %s18, %s30
    %p32 = scmp.eq.s32.totalorder %s31, 0
    %s34 = sadd.s32 %s33, 1
    %s35 = scalar_select %p32, %s33, %s34
    %p38 = pneg %p32
    %p39 = scmp.eq.s32.totalorder %s11, 7
    %p40 = por %p38, %p39
    %p41 = scmp.ne.s32.totalorder %s33, %s36
    %p42 = scmp.eq.s32.totalorder %s11, 0
    %p43 = por %p41, %p42
    %p44 = scmp.ne.s32.totalorder %s33, %s36
    %p45 = scmp.eq.s32.totalorder %s16, 7
    %p46 = por %p44, %p45
    %p47 = scmp.ne.s32.totalorder %s36, %s37
    %p48 = scmp.eq.s32.totalorder %s16, 0
    %p49 = por %p47, %p48
    %p50 = scmp.ne.s32.totalorder %s36, %s37
    %p51 = scmp.eq.s32.totalorder %s17, 7
    %p52 = por %p50, %p51
    %p54 = scmp.ne.s32.totalorder %s37, %s53
    %p55 = scmp.eq.s32.totalorder %s17, 0
    %p56 = por %p54, %p55
    %s57 = ssub.s32 %s19, %s26
    %p58 = scmp.eq.s32.totalorder %s57, 0
    %s60 = sadd.s32 %s59, 1
    %s61 = scalar_select %p58, %s59, %s60
    %p64 = pneg %p58
    %p65 = scmp.eq.s32.totalorder %s11, 7
    %p66 = por %p64, %p65
    %p67 = scmp.ne.s32.totalorder %s59, %s62
    %p68 = scmp.eq.s32.totalorder %s11, 0
    %p69 = por %p67, %p68
    %p70 = scmp.ne.s32.totalorder %s59, %s62
    %p71 = scmp.eq.s32.totalorder %s16, 7
    %p72 = por %p70, %p71
    %p73 = scmp.ne.s32.totalorder %s62, %s63
    %p74 = scmp.eq.s32.totalorder %s16, 0
    %p75 = por %p73, %p74
    %p76 = scmp.ne.s32.totalorder %s62, %s63
    %p77 = scmp.eq.s32.totalorder %s17, 7
    %p78 = por %p76, %p77
    %p80 = scmp.ne.s32.totalorder %s63, %s79
    %p81 = scmp.eq.s32.totalorder %s17, 0
    %p82 = por %p80, %p81
    %s83 = ssub.s32 %s19, %s26
    %s84 = ssub.s32 %s18, %s30
    %s85 = sor.u32 %s83, %s84
    %p86 = scmp.eq.s32.totalorder %s85, 0
    %s88 = sadd.s32 %s87, 1
    %s89 = scalar_select %p86, %s87, %s88
    %p92 = pneg %p86
    %p93 = scmp.eq.s32.totalorder %s11, 7
    %p94 = por %p92, %p93
    %p95 = scmp.ne.s32.totalorder %s87, %s90
    %p96 = scmp.eq.s32.totalorder %s11, 0
    %p97 = por %p95, %p96
    %p98 = scmp.ne.s32.totalorder %s87, %s90
    %p99 = scmp.eq.s32.totalorder %s16, 7
    %p100 = por %p98, %p99
    %p101 = scmp.ne.s32.totalorder %s90, %s91
    %p102 = scmp.eq.s32.totalorder %s16, 0
    %p103 = por %p101, %p102
    %p104 = scmp.ne.s32.totalorder %s90, %s91
    %p105 = scmp.eq.s32.totalorder %s17, 7
    %p106 = por %p104, %p105
    %p108 = scmp.ne.s32.totalorder %s91, %s107
    %p109 = scmp.eq.s32.totalorder %s17, 0
    %p110 = por %p108, %p109
    %s111 = ssub.s32 %s19, %s26
    %s112 = ssub.s32 %s18, %s30
    %s113 = sor.u32 %s111, %s112
    %p114 = scmp.eq.s32.totalorder %s113, 0
    %s116 = sadd.s32 %s115, 1
    %s117 = scalar_select %p114, %s115, %s116
    %p120 = pneg %p114
    %p121 = scmp.eq.s32.totalorder %s11, 7
    %p122 = por %p120, %p121
    %p123 = scmp.ne.s32.totalorder %s115, %s118
    %p124 = scmp.eq.s32.totalorder %s11, 0
    %p125 = por %p123, %p124
    %p126 = scmp.ne.s32.totalorder %s115, %s118
    %p127 = scmp.eq.s32.totalorder %s16, 7
    %p128 = por %p126, %p127
    %p129 = scmp.ne.s32.totalorder %s118, %s119
    %p130 = scmp.eq.s32.totalorder %s16, 0
    %p131 = por %p129, %p130
    %p132 = scmp.ne.s32.totalorder %s118, %s119
    %p133 = scmp.eq.s32.totalorder %s17, 7
    %p134 = por %p132, %p133
    %p136 = scmp.ne.s32.totalorder %s119, %s135
    %p137 = scmp.eq.s32.totalorder %s17, 0
    %p138 = por %p136, %p137
    %s139 = ssub.s32 %s19, %s26
    %s140 = ssub.s32 %s18, %s30
    %s141 = sor.u32 %s139, %s140
    %p142 = scmp.eq.s32.totalorder %s141, 0
    %s144 = sadd.s32 %s143, 1
    %s145 = scalar_select %p142, %s143, %s144
    %p148 = pneg %p142
    %p149 = scmp.eq.s32.totalorder %s11, 7
    %p150 = por %p148, %p149
    %p151 = scmp.ne.s32.totalorder %s143, %s146
    %p152 = scmp.eq.s32.totalorder %s11, 0
    %p153 = por %p151, %p152
    %p154 = scmp.ne.s32.totalorder %s143, %s146
    %p155 = scmp.eq.s32.totalorder %s16, 7
    %p156 = por %p154, %p155
    %p157 = scmp.ne.s32.totalorder %s146, %s147
    %p158 = scmp.eq.s32.totalorder %s16, 0
    %p159 = por %p157, %p158
    %p160 = scmp.ne.s32.totalorder %s146, %s147
    %p161 = scmp.eq.s32.totalorder %s17, 7
    %p162 = por %p160, %p161
    %p164 = scmp.ne.s32.totalorder %s147, %s163
    %p165 = scmp.eq.s32.totalorder %s17, 0
    %p166 = por %p164, %p165
    %p167 = scmp.le.s32.totalorder 1, %s11
    %p168 = scmp.lt.s32.totalorder %s11, 9
    %p169 = pnand %p167, %p168
    %p170 = pneg %p169
    // Predicated region
    $region9: #{tpu_custom_call.1} parent=5 // pred_check
      _
    $region10: #{tpu_custom_call.1} parent=5 // pred_check_branch
      %172 = sbr.rel (%p169) target = $region12
    $region11: #{tpu_custom_call.1} parent=5 // pred_region
      %s173 = ssub.s32 %s11, 1
    $region12: #{tpu_custom_call.1} parent=5 // pred_fallthru
      _
    %p174 = scmp.lt.s32.totalorder %s11, 8
    // Predicated region
    $region13: #{tpu_custom_call.1} parent=5 // pred_check
      %p175 = pneg %p174
    $region14: #{tpu_custom_call.1} parent=5 // pred_check_branch
      %177 = sbr.rel (%p175) target = $region16
    $region15: #{tpu_custom_call.1} parent=5 // pred_region
      // Predicated region
      $region17: #{tpu_custom_call.1} parent=15 // pred_check
        %p178 = pneg %p43
      $region18: #{tpu_custom_call.1} parent=15 // pred_check_branch
        %180 = sbr.rel (%p178) target = $region20
      $region19: #{tpu_custom_call.1} parent=15 // pred_region
        %p181 = scmp.lt.s32.totalorder %s18, 1
        %s182 = scalar_select %p181, %s18, 1
        %s183 = smul.addr %s182, 8
        %s184 = scalar_lea.vmem %s0, %s183
      $region20: #{tpu_custom_call.1} parent=15 // pred_fallthru
        _
      // Predicated region
      $region21: #{tpu_custom_call.1} parent=15 // pred_check
        %p185 = pneg %p69
      $region22: #{tpu_custom_call.1} parent=15 // pred_check_branch
        %187 = sbr.rel (%p185) target = $region24
      $region23: #{tpu_custom_call.1} parent=15 // pred_region
        %p188 = scmp.lt.s32.totalorder %s19, 3
        %s189 = scalar_select %p188, %s19, 3
        %s190 = smul.addr %s189, 2
        %s191 = smul.addr %s190, 8
        %s192 = scalar_lea.vmem %s1, %s191
      $region24: #{tpu_custom_call.1} parent=15 // pred_fallthru
        _
    $region16: #{tpu_custom_call.1} parent=5 // pred_fallthru
      _
    %p193 = scmp.le.s32.totalorder 1, %s11
    %p194 = scmp.lt.s32.totalorder %s11, 9
    %p195 = pnand %p193, %p194
    %p196 = pneg %p195
    // Predicated region
    $region25: #{tpu_custom_call.1} parent=5 // pred_check
      _
    $region26: #{tpu_custom_call.1} parent=5 // pred_check_branch
      %198 = sbr.rel (%p195) target = $region28
    $region27: #{tpu_custom_call.1} parent=5 // pred_region
      %s199 = ssub.s32 %s11, 1
      %p200 = scmp.lt.s32.totalorder %s20, 1
      %s201 = scalar_select %p200, %s20, 1
      %s202 = smul.addr %s201, 8
      %s203 = scalar_lea.vmem %s0, %s202
      %p204 = pneg %p49
      %p205 = pneg %p46
      %p206 = scmp.lt.s32.totalorder %s21, 3
      %s207 = scalar_select %p206, %s21, 3
      %s208 = smul.addr %s207, 2
      %s209 = smul.addr %s208, 8
      %s210 = scalar_lea.vmem %s1, %s209
      %p211 = pneg %p75
      %p212 = pneg %p72
      %p213 = pneg %p103
      %p214 = pneg %p100
      %p215 = scmp.lt.s32.totalorder %s21, 3
      %s216 = scalar_select %p215, %s21, 3
      %p217 = scmp.lt.s32.totalorder %s20, 1
      %s218 = scalar_select %p217, %s20, 1
      %s219 = smul.addr %s216, 2
      %s220 = sadd.s32 %s218, %s219
      %s221 = smul.addr %s220, 8
      %s222 = scalar_lea.vmem %s2, %s221
      %p223 = pneg %p131
      %p224 = pneg %p128
      %p225 = scmp.lt.s32.totalorder %s21, 3
      %s226 = scalar_select %p225, %s21, 3
      %p227 = scmp.lt.s32.totalorder %s20, 1
      %s228 = scalar_select %p227, %s20, 1
      %s229 = smul.addr %s226, 2
      %s230 = sadd.s32 %s228, %s229
      %s231 = smul.addr %s230, 8
      %s232 = scalar_lea.vmem %s3, %s231
      %p233 = pneg %p159
      %p234 = pneg %p156
      %p235 = scmp.lt.s32.totalorder %s21, 3
      %s236 = scalar_select %p235, %s21, 3
      %p237 = scmp.lt.s32.totalorder %s20, 1
      %s238 = scalar_select %p237, %s20, 1
      %s239 = smul.addr %s236, 2
      %s240 = sadd.s32 %s238, %s239
      %s241 = smul.addr %s240, 8
      %s242 = scalar_lea.vmem %s4, %s241
      %p243 = scmp.lt.s32.totalorder %s20, 1
      %s244 = scalar_select %p243, %s20, 1
      %s245 = smul.addr %s244, 8
      %s246 = scalar_lea.vmem %s0, %s245
      %p247 = scmp.lt.s32.totalorder %s21, 3
      %s248 = scalar_select %p247, %s21, 3
      %s249 = smul.addr %s248, 2
      %s250 = smul.addr %s249, 8
      %s251 = scalar_lea.vmem %s1, %s250
      %p252 = scmp.lt.s32.totalorder %s21, 3
      %s253 = scalar_select %p252, %s21, 3
      %p254 = scmp.lt.s32.totalorder %s20, 1
      %s255 = scalar_select %p254, %s20, 1
      %s256 = smul.addr %s253, 2
      %s257 = sadd.s32 %s255, %s256
      %s258 = smul.addr %s257, 8
      %s259 = scalar_lea.vmem %s2, %s258
      %p260 = scmp.lt.s32.totalorder %s21, 3
      %s261 = scalar_select %p260, %s21, 3
      %p262 = scmp.lt.s32.totalorder %s20, 1
      %s263 = scalar_select %p262, %s20, 1
      %s264 = smul.addr %s261, 2
      %s265 = sadd.s32 %s263, %s264
      %s266 = smul.addr %s265, 8
      %s267 = scalar_lea.vmem %s3, %s266
      %p268 = scmp.lt.s32.totalorder %s21, 3
      %s269 = scalar_select %p268, %s21, 3
      %p270 = scmp.lt.s32.totalorder %s20, 1
      %s271 = scalar_select %p270, %s20, 1
      %s272 = smul.addr %s269, 2
      %s273 = sadd.s32 %s271, %s272
      %s274 = smul.addr %s273, 8
      %s275 = scalar_lea.vmem %s4, %s274
      %v276 = vld [vmem:[%s246] sm:$0xff]
      %v277 = vld [vmem:[%s251] sm:$0xff]
      %v278 = vld [vmem:[%s251 + $0x8] sm:$0xff]
      %vm279 = vcmask 130048
      %v281 = vsel %vm279, %v276, 0
      %283 = vmatpush.msra.mxu0 0.0
      %284 = vmatpush.msra.mxu0 0.0
      %285 = vmatpush.msra.mxu0 0.0
      %286 = vmatpush.msra.mxu0 0.0
      %287 = vmatpush.msra.mxu0 0.0
      %288 = vmatpush.msra.mxu0 0.0
      %289 = vmatpush.msra.mxu0 0.0
      %290 = vmatpush.msra.mxu0 0.0
      %291 = vmatpush.msra.mxu0 0.0
      %292 = vmatpush.msra.mxu0 0.0
      %293 = vmatpush.msra.mxu0 0.0
      %294 = vmatpush.msra.mxu0 0.0
      %295 = vmatpush.msra.mxu0 0.0
      %296 = vmatpush.msra.mxu0 0.0
      %297 = vmatpush.msra.mxu0 %v278
      %298 = vmatpush.msra.mxu0 %v277
      %299 = vmatmul.f32.gmra.mxu0 %v281
      %v300 = vpop.f32.mrf.mxu0
      %v301 = vadd.f32 0.0, %v300
      %302 = vdwg.mxu0
      %vm303 = vcmask 64512
      %304 = vst.msk [vmem:[%s259] sm:$0xff] %vm303, %v301
      %306 = vrot.lane.b32.xlu0 %v301, 120
      %v307 = vpop.permute.xlu0 %306
      %vm309 = vcmask 7168
      %310 = vst.msk [vmem:[%s267] sm:$0xff] %vm309, %v307
      %311 = vrot.lane.b32.xlu0 %v301, 119
      %v312 = vpop.permute.xlu0 %311
      %314 = vst.msk [vmem:[%s275] sm:$0xff] %vm309, %v312
      %p315 = scmp.lt.s32.totalorder %s21, 3
      %s316 = scalar_select %p315, %s21, 3
      %p317 = scmp.lt.s32.totalorder %s20, 1
      %s318 = scalar_select %p317, %s20, 1
      %s319 = smul.addr %s316, 2
      %s320 = sadd.s32 %s318, %s319
      %s321 = smul.addr %s320, 8
      %s322 = scalar_lea.vmem %s2, %s321
      %p323 = scmp.lt.s32.totalorder %s21, 3
      %s324 = scalar_select %p323, %s21, 3
      %p325 = scmp.lt.s32.totalorder %s20, 1
      %s326 = scalar_select %p325, %s20, 1
      %s327 = smul.addr %s324, 2
      %s328 = sadd.s32 %s326, %s327
      %s329 = smul.addr %s328, 8
      %s330 = scalar_lea.vmem %s3, %s329
      %p331 = scmp.lt.s32.totalorder %s21, 3
      %s332 = scalar_select %p331, %s21, 3
      %p333 = scmp.lt.s32.totalorder %s20, 1
      %s334 = scalar_select %p333, %s20, 1
      %s335 = smul.addr %s332, 2
      %s336 = sadd.s32 %s334, %s335
      %s337 = smul.addr %s336, 8
      %s338 = scalar_lea.vmem %s4, %s337
      // Predicated region
      $region29: #{tpu_custom_call.1} parent=27 // pred_check
        %p339 = pneg %p100
      $region30: #{tpu_custom_call.1} parent=27 // pred_check_branch
        %341 = sbr.rel (%p339) target = $region32
      $region31: #{tpu_custom_call.1} parent=27 // pred_region
        _
      $region32: #{tpu_custom_call.1} parent=27 // pred_fallthru
        _
      // Predicated region
      $region33: #{tpu_custom_call.1} parent=27 // pred_check
        %p342 = pneg %p128
      $region34: #{tpu_custom_call.1} parent=27 // pred_check_branch
        %344 = sbr.rel (%p342) target = $region36
      $region35: #{tpu_custom_call.1} parent=27 // pred_region
        _
      $region36: #{tpu_custom_call.1} parent=27 // pred_fallthru
        _
      // Predicated region
      $region37: #{tpu_custom_call.1} parent=27 // pred_check
        %p345 = pneg %p156
      $region38: #{tpu_custom_call.1} parent=27 // pred_check_branch
        %347 = sbr.rel (%p345) target = $region40
      $region39: #{tpu_custom_call.1} parent=27 // pred_region
        _
      $region40: #{tpu_custom_call.1} parent=27 // pred_fallthru
        _
    $region28: #{tpu_custom_call.1} parent=5 // pred_fallthru
      _
    %p348 = scmp.le.s32.totalorder 2, %s11
    // Predicated region
    $region41: #{tpu_custom_call.1} parent=5 // pred_check
      %p349 = pneg %p348
    $region42: #{tpu_custom_call.1} parent=5 // pred_check_branch
      %351 = sbr.rel (%p349) target = $region44
    $region43: #{tpu_custom_call.1} parent=5 // pred_region
      %s352 = ssub.s32 %s11, 2
      // Predicated region
      $region45: #{tpu_custom_call.1} parent=43 // pred_check
        %p353 = pneg %p106
      $region46: #{tpu_custom_call.1} parent=43 // pred_check_branch
        %355 = sbr.rel (%p353) target = $region48
      $region47: #{tpu_custom_call.1} parent=43 // pred_region
        %p356 = scmp.lt.s32.totalorder %s23, 3
        %s357 = scalar_select %p356, %s23, 3
        %p358 = scmp.lt.s32.totalorder %s22, 1
        %s359 = scalar_select %p358, %s22, 1
        %s360 = smul.addr %s357, 2
        %s361 = sadd.s32 %s359, %s360
        %s362 = smul.addr %s361, 8
        %s363 = scalar_lea.vmem %s2, %s362
      $region48: #{tpu_custom_call.1} parent=43 // pred_fallthru
        _
      // Predicated region
      $region49: #{tpu_custom_call.1} parent=43 // pred_check
        %p364 = pneg %p134
      $region50: #{tpu_custom_call.1} parent=43 // pred_check_branch
        %366 = sbr.rel (%p364) target = $region52
      $region51: #{tpu_custom_call.1} parent=43 // pred_region
        %p367 = scmp.lt.s32.totalorder %s23, 3
        %s368 = scalar_select %p367, %s23, 3
        %p369 = scmp.lt.s32.totalorder %s22, 1
        %s370 = scalar_select %p369, %s22, 1
        %s371 = smul.addr %s368, 2
        %s372 = sadd.s32 %s370, %s371
        %s373 = smul.addr %s372, 8
        %s374 = scalar_lea.vmem %s3, %s373
      $region52: #{tpu_custom_call.1} parent=43 // pred_fallthru
        _
      // Predicated region
      $region53: #{tpu_custom_call.1} parent=43 // pred_check
        %p375 = pneg %p162
      $region54: #{tpu_custom_call.1} parent=43 // pred_check_branch
        %377 = sbr.rel (%p375) target = $region56
      $region55: #{tpu_custom_call.1} parent=43 // pred_region
        %p378 = scmp.lt.s32.totalorder %s23, 3
        %s379 = scalar_select %p378, %s23, 3
        %p380 = scmp.lt.s32.totalorder %s22, 1
        %s381 = scalar_select %p380, %s22, 1
        %s382 = smul.addr %s379, 2
        %s383 = sadd.s32 %s381, %s382
        %s384 = smul.addr %s383, 8
        %s385 = scalar_lea.vmem %s4, %s384
      $region56: #{tpu_custom_call.1} parent=43 // pred_fallthru
        _
    $region44: #{tpu_custom_call.1} parent=5 // pred_fallthru
      _
  $region6: #{tpu_custom_call.1} parent=0 // loop_footer
    %s15 = sadd.s32 1, %s11
  $region7: #{tpu_custom_call.1} parent=0 // loop_footer_branch
    %10 = sbr.rel target = $region3
  $region8: #{tpu_custom_call.1} parent=0 // loop_exit
    _

</llo_original>
